<compile_context>
chip_gen: v6e
topology: v6e:2x2x1
jax: 0.10.0
libtpu: 0.0.40
codegen_flags: <defaults>
</compile_context>

<pallas_src>
import jax
import jax.numpy as jnp
from jax import lax
from jax.experimental import pallas as pl
from jax.experimental.pallas import tpu as pltpu

# ------------------------- model dimensions -------------------------
B, C, H, W = 2, 4, 16, 16          # input x: [B, C, H, W] (NCHW)
KH = KW = 3
F = 32                              # backbone.num_features (feat_planes)
NUM_CLASSES = 10
K = C * KH * KW                     # im2col depth = 36
HW = H * W                          # 256
BHW = B * HW                        # 512

KP = 48                             # contraction dim: K + 1 (ones col), padded to bf16 tile
NPAD = 128                          # conv-output / feat lanes
OUT_LANES = 128                     # lane-dense output slab width
B_PAD = 8                           # output rows padded to one sublane tile
CONST_K = K                         # ones column index in patches (bias row in wconv_aug)
CONST_N = F                         # constant-1 lane carried through conv / feat


# ------------------------- Pallas kernel -------------------------
def mtcnet_kernel(patches_ref, wconv_ref, whead_ref, out_ref):
    # Conv3x3-as-matmul over the whole batch (bf16 MXU, f32 accumulate);
    # conv bias folded in via the ones column.  [BHW, KP] x [KP, NPAD].
    conv = jnp.dot(patches_ref[...], wconv_ref[...],
                   preferred_element_type=jnp.float32)
    conv = jnp.maximum(conv, 0.0)          # ReLU; const-1 lane stays exactly 1.0

    # Global average pool as a pooling matmul on the MXU:
    # pool[b, p] = 1/HW if p belongs to batch b else 0.  [B_PAD, BHW] x [BHW, NPAD].
    row = lax.broadcasted_iota(jnp.int32, (B_PAD, BHW), 0)
    col = lax.broadcasted_iota(jnp.int32, (B_PAD, BHW), 1)
    mask = (col >= row * HW) & (col < (row + 1) * HW)
    pool = jnp.where(mask, jnp.float32(1.0 / HW), jnp.float32(0.0))
    feat_aug = jnp.dot(pool, conv, preferred_element_type=jnp.float32)

    # Fused head matmul (f32): identity block copies feat into lanes 0..F-1,
    # wfc/bfc -> logits in lanes F..F+NC-1, wd/bd -> domain logit in lane F+NC.
    out_ref[...] = jnp.dot(feat_aug, whead_ref[...],
                           preferred_element_type=jnp.float32)


# ------------------------- wrapper -------------------------
def _im2col_3x3(x):
    """NCHW, pad=1, stride=1 -> [B, H*W, C*9] with (C, kh, kw) flattening order."""
    b, c, h, w = x.shape
    xp = jnp.pad(x, ((0, 0), (0, 0), (1, 1), (1, 1)))
    cols = [xp[:, :, di:di + h, dj:dj + w]
            for di in range(KH) for dj in range(KW)]
    patches = jnp.stack(cols, axis=2)                # [B, C, 9, H, W]
    patches = patches.reshape(b, c * KH * KW, h * w)
    return jnp.transpose(patches, (0, 2, 1))         # [B, H*W, C*9]


def augment_params(params):
    """One-time host-side prep: fold biases / identity / heads into two slabs."""
    wconv, bconv, wfc, bfc, wd, bd = params

    # conv weight: [KP, NPAD] bf16, bias folded into row CONST_K, const-1 lane.
    wconv_aug = jnp.zeros((KP, NPAD), jnp.float32)
    wconv_aug = wconv_aug.at[:K, :F].set(wconv)
    wconv_aug = wconv_aug.at[CONST_K, :F].set(bconv[0])
    wconv_aug = wconv_aug.at[CONST_K, CONST_N].set(1.0)
    wconv_aug = wconv_aug.astype(jnp.bfloat16)

    # fused head weight (f32): feat passthrough + fc head + domain head.
    whead_aug = jnp.zeros((NPAD, OUT_LANES), jnp.float32)
    whead_aug = whead_aug.at[:F, :F].set(jnp.eye(F, dtype=jnp.float32))
    whead_aug = whead_aug.at[:F, F:F + NUM_CLASSES].set(wfc)
    whead_aug = whead_aug.at[CONST_N, F:F + NUM_CLASSES].set(bfc[0])
    whead_aug = whead_aug.at[:F, F + NUM_CLASSES].set(wd[:, 0])
    whead_aug = whead_aug.at[CONST_N, F + NUM_CLASSES].set(bd[0, 0])

    return wconv_aug, whead_aug


@jax.jit
def mtcnet_forward(x, wconv_aug, whead_aug):
    # im2col + ones column (+ small zero pad to KP), cast to bf16.
    patches = _im2col_3x3(x).reshape(BHW, K)                       # [512, 36]
    ones_col = jnp.ones((BHW, 1), jnp.float32)
    zero_pad = jnp.zeros((BHW, KP - K - 1), jnp.float32)
    patches_aug = jnp.concatenate([patches, ones_col, zero_pad],
                                  axis=1).astype(jnp.bfloat16)     # [512, 48]

    out_slab = pl.pallas_call(
        mtcnet_kernel,
        out_shape=jax.ShapeDtypeStruct((B_PAD, OUT_LANES), jnp.float32),
        grid_spec=pltpu.PrefetchScalarGridSpec(
            num_scalar_prefetch=0,
            grid=(1,),
            in_specs=[
                pl.BlockSpec((BHW, KP), lambda i: (0, 0)),          # patches (bf16)
                pl.BlockSpec((KP, NPAD), lambda i: (0, 0)),         # conv weight (aug, bf16)
                pl.BlockSpec((NPAD, OUT_LANES), lambda i: (0, 0)),  # fused head weight (f32)
            ],
            out_specs=pl.BlockSpec((B_PAD, OUT_LANES), lambda i: (0, 0)),
        ),
        compiler_params=pltpu.CompilerParams(
            dimension_semantics=("arbitrary",)),
    )(patches_aug, wconv_aug, whead_aug)

    return {
        "feat": out_slab[:B, :F],
        "logits": out_slab[:B, F:F + NUM_CLASSES],
        "domain_logits": out_slab[:B, F + NUM_CLASSES:F + NUM_CLASSES + 1],
    }


def init_params(key):
    k1, k2, k3, _ = jax.random.split(key, 4)
    # backbone conv: PyTorch weight [F, C, KH, KW] -> matmul form [C*KH*KW, F]
    wconv_t = jax.random.normal(k1, (F, C, KH, KW), jnp.float32) * 0.05
    wconv = wconv_t.reshape(F, K).T                       # [K, F]
    bconv = jnp.zeros((1, F), jnp.float32)
    # backbone fc: PyTorch Linear weight [NC, F] -> [F, NC]
    wfc = (jax.random.normal(k2, (NUM_CLASSES, F), jnp.float32) * 0.05).T
    bfc = jnp.zeros((1, NUM_CLASSES), jnp.float32)
    # domain_classifier: Linear(F, 1), xavier_normal_ weight, zero bias
    xavier_std = (2.0 / (F + 1)) ** 0.5
    wd = (jax.random.normal(k3, (1, F), jnp.float32) * xavier_std).T   # [F, 1]
    bd = jnp.zeros((1, 1), jnp.float32)
    return (wconv, bconv, wfc, bfc, wd, bd)


def _reference_forward(x, params):
    """Pure-JAX f32 reference of the same forward."""
    wconv, bconv, wfc, bfc, wd, bd = params
    patches = _im2col_3x3(x)
    conv = jnp.maximum(jnp.einsum("bpk,kf->bpf", patches, wconv) + bconv[None], 0.0)
    feat = jnp.mean(conv, axis=1)
    logits = feat @ wfc + bfc
    dom = feat @ wd + bd
    return feat, logits, dom


if __name__ == "__main__":
    key = jax.random.PRNGKey(0)
    kx, kp = jax.random.split(key)
    x = jax.random.normal(kx, (B, C, H, W), jnp.float32)   # NCHW input
    params = init_params(kp)

    # One-time param augmentation (hoisted out of the per-call path).
    wconv_aug, whead_aug = augment_params(params)
    wconv_aug, whead_aug = jax.block_until_ready((wconv_aug, whead_aug))

    out = mtcnet_forward(x, wconv_aug, whead_aug)
    jax.block_until_ready(out)

    # sanity check against a pure-JAX f32 reference (kernel conv runs in bf16,
    # so the tolerance is loosened accordingly)
    feat_r, logits_r, dom_r = _reference_forward(x, params)
    assert jnp.allclose(out["feat"], feat_r, atol=2e-2, rtol=2e-2)
    assert jnp.allclose(out["logits"], logits_r, atol=2e-2, rtol=2e-2)
    assert jnp.allclose(out["domain_logits"], dom_r, atol=2e-2, rtol=2e-2)

    print("KERNEL_OK")
</pallas_src>

<mosaic_0001>
module attributes {stable_mosaic.version = 11 : i64} {
  func.func @mtcnet_kernel(%arg0: i32, %arg1: memref<512x48xbf16, #tpu.memory_space<vmem>>, %arg2: memref<48x128xbf16, #tpu.memory_space<vmem>>, %arg3: memref<128x128xf32, #tpu.memory_space<vmem>>, %arg4: memref<8x128xf32, #tpu.memory_space<vmem>>) attributes {dimension_semantics = [#tpu.dimension_semantics<arbitrary>], iteration_bounds = array<i64: 1>, scalar_prefetch = 0 : i64, scratch_operands = 0 : i64, tpu.core_type = #tpu.core_type<tc>, window_params = [{pipeline_mode = #tpu.pipeline_mode<synchronous>, transform_indices = @transform_0, window_bounds = array<i64: 512, 48>}, {pipeline_mode = #tpu.pipeline_mode<synchronous>, transform_indices = @transform_1, window_bounds = array<i64: 48, 128>}, {pipeline_mode = #tpu.pipeline_mode<synchronous>, transform_indices = @transform_2, window_bounds = array<i64: 128, 128>}, {pipeline_mode = #tpu.pipeline_mode<synchronous>, transform_indices = @transform_3, window_bounds = array<i64: 8, 128>}]} {
    %c0 = arith.constant 0 : index
    %c0_0 = arith.constant 0 : index
    %0 = vector.load %arg1[%c0, %c0_0] : memref<512x48xbf16, #tpu.memory_space<vmem>>, vector<512x48xbf16>
    %c0_1 = arith.constant 0 : index
    %c0_2 = arith.constant 0 : index
    %1 = vector.load %arg2[%c0_1, %c0_2] : memref<48x128xbf16, #tpu.memory_space<vmem>>, vector<48x128xbf16>
    %cst = arith.constant dense<0.000000e+00> : vector<512x128xf32>
    %2 = tpu.matmul %0, %1, %cst {dimension_numbers = #tpu.dot_dimension_numbers<[1], [0], [0], [1], [0, 0, 1, 1], [], []>} : vector<512x48xbf16>, vector<48x128xbf16>, vector<512x128xf32> -> vector<512x128xf32>
    %cst_3 = arith.constant 0.000000e+00 : f32
    %3 = vector.broadcast %cst_3 : f32 to vector<512x128xf32>
    %4 = arith.maximumf %2, %3 : vector<512x128xf32>
    %5 = tpu.iota {dimensions = array<i32: 0>} : vector<8x512xi32>
    %6 = tpu.iota {dimensions = array<i32: 1>} : vector<8x512xi32>
    %c256_i32 = arith.constant 256 : i32
    %7 = vector.broadcast %c256_i32 : i32 to vector<8x512xi32>
    %8 = arith.muli %5, %7 : vector<8x512xi32>
    %9 = arith.cmpi sge, %6, %8 : vector<8x512xi32>
    %c1_i32 = arith.constant 1 : i32
    %10 = vector.broadcast %c1_i32 : i32 to vector<8x512xi32>
    %11 = arith.addi %5, %10 : vector<8x512xi32>
    %c256_i32_4 = arith.constant 256 : i32
    %12 = vector.broadcast %c256_i32_4 : i32 to vector<8x512xi32>
    %13 = arith.muli %11, %12 : vector<8x512xi32>
    %14 = arith.cmpi slt, %6, %13 : vector<8x512xi32>
    %15 = arith.andi %9, %14 : vector<8x512xi1>
    %cst_5 = arith.constant 3.906250e-03 : f32
    %cst_6 = arith.constant 0.000000e+00 : f32
    %16 = vector.broadcast %cst_5 : f32 to vector<8x512xf32>
    %17 = vector.broadcast %cst_6 : f32 to vector<8x512xf32>
    %18 = arith.select %15, %16, %17 : vector<8x512xi1>, vector<8x512xf32>
    %cst_7 = arith.constant dense<0.000000e+00> : vector<8x128xf32>
    %19 = tpu.matmul %18, %4, %cst_7 {dimension_numbers = #tpu.dot_dimension_numbers<[1], [0], [0], [1], [0, 0, 1, 1], [], []>} : vector<8x512xf32>, vector<512x128xf32>, vector<8x128xf32> -> vector<8x128xf32>
    %c0_8 = arith.constant 0 : index
    %c0_9 = arith.constant 0 : index
    %20 = vector.load %arg3[%c0_8, %c0_9] : memref<128x128xf32, #tpu.memory_space<vmem>>, vector<128x128xf32>
    %cst_10 = arith.constant dense<0.000000e+00> : vector<8x128xf32>
    %21 = tpu.matmul %19, %20, %cst_10 {dimension_numbers = #tpu.dot_dimension_numbers<[1], [0], [0], [1], [0, 0, 1, 1], [], []>} : vector<8x128xf32>, vector<128x128xf32>, vector<8x128xf32> -> vector<8x128xf32>
    %c0_11 = arith.constant 0 : index
    %c0_12 = arith.constant 0 : index
    %22 = vector.load %arg4[%c0_11, %c0_12] : memref<8x128xf32, #tpu.memory_space<vmem>>, vector<8x128xf32>
    tpu.vector_store %arg4[%c0_11, %c0_12], %21 {strides = array<i32>} : memref<8x128xf32, #tpu.memory_space<vmem>>, vector<8x128xf32>,
    return
  }
  func.func @transform_0(%arg0: i32) -> (i32, i32) {
    %c0_i32 = arith.constant 0 : i32
    %c0_i32_0 = arith.constant 0 : i32
    %c0_i32_1 = arith.constant 0 : i32
    return %c0_i32, %c0_i32_0 : i32, i32
  }
  func.func @transform_1(%arg0: i32) -> (i32, i32) {
    %c0_i32 = arith.constant 0 : i32
    %c0_i32_0 = arith.constant 0 : i32
    %c0_i32_1 = arith.constant 0 : i32
    return %c0_i32, %c0_i32_0 : i32, i32
  }
  func.func @transform_2(%arg0: i32) -> (i32, i32) {
    %c0_i32 = arith.constant 0 : i32
    %c0_i32_0 = arith.constant 0 : i32
    %c0_i32_1 = arith.constant 0 : i32
    return %c0_i32, %c0_i32_0 : i32, i32
  }
  func.func @transform_3(%arg0: i32) -> (i32, i32) {
    %c0_i32 = arith.constant 0 : i32
    %c0_i32_0 = arith.constant 0 : i32
    %c0_i32_1 = arith.constant 0 : i32
    return %c0_i32, %c0_i32_0 : i32, i32
  }
}

</mosaic_0001>

<llo_original>
// kernel: mtcnet_forward.1
$region0: #{mtcnet_forward.1}
  #allocation0 [shape = 'u32[]', space=smem, size = 0x4, offset = 0x4, fixed_abs, tag = 'smem constant byte address 0x4 - core index']
  #allocation1 [shape = 'u32[144,128]{1,0:T(1,128)}', space=vmem, size = 0x12000, scoped, tag = 'internal scratch']
  %s0 = inlined_call_operand.vmem [shape: bf16[512,48], index: 0, kind: input, shape index: {}]
  %s1 = inlined_call_operand.vmem [shape: bf16[48,128], index: 1, kind: input, shape index: {}]
  %s2 = inlined_call_operand.vmem [shape: f32[128,128], index: 2, kind: input, shape index: {}]
  %s3 = inlined_call_operand.vmem [shape: f32[8,128], index: 3, kind: output, shape index: {}]
  %s4 = sld [smem:[#allocation0]]
  $region22: #{mtcnet_forward.1} parent=0
    _
  %s6 = ssub.s32 1, %s4
  %s7 = scalar_select 0, %s6, %s4
  // Predicated region
  $region2: #{mtcnet_forward.1} parent=0 // pred_check
    _
  $region3: #{mtcnet_forward.1} parent=0 // pred_check_branch
    %9 = sbr.rel (0) target = $region5
  $region4: #{mtcnet_forward.1} parent=0 // pred_region
    _
  $region5: #{mtcnet_forward.1} parent=0 // pred_fallthru
    _
  // Predicated region
  $region6: #{mtcnet_forward.1} parent=0 // pred_check
    _
  $region7: #{mtcnet_forward.1} parent=0 // pred_check_branch
    %11 = sbr.rel (0) target = $region9
  $region8: #{mtcnet_forward.1} parent=0 // pred_region
    _
  $region9: #{mtcnet_forward.1} parent=0 // pred_fallthru
    _
  // Predicated region
  $region10: #{mtcnet_forward.1} parent=0 // pred_check
    _
  $region11: #{mtcnet_forward.1} parent=0 // pred_check_branch
    %13 = sbr.rel (0) target = $region13
  $region12: #{mtcnet_forward.1} parent=0 // pred_region
    _
  $region13: #{mtcnet_forward.1} parent=0 // pred_fallthru
    _
  %v15 = vld [vmem:[%s0] sm:$0xf]
  %v16 = vld [vmem:[%s0 + $0x4] sm:$0xf]
  %v17 = vld [vmem:[%s0 + $0x8] sm:$0xf]
  %v18 = vld [vmem:[%s0 + $0xc] sm:$0xf]
  %v19 = vld [vmem:[%s0 + $0x10] sm:$0xf]
  %v20 = vld [vmem:[%s0 + $0x14] sm:$0xf]
  %v21 = vld [vmem:[%s0 + $0x18] sm:$0xf]
  %v22 = vld [vmem:[%s0 + $0x1c] sm:$0xf]
  %v23 = vld [vmem:[%s0 + $0x20] sm:$0xf]
  %v24 = vld [vmem:[%s0 + $0x24] sm:$0xf]
  %v25 = vld [vmem:[%s0 + $0x28] sm:$0xf]
  %v26 = vld [vmem:[%s0 + $0x2c] sm:$0xf]
  %v27 = vld [vmem:[%s0 + $0x30] sm:$0xf]
  %v28 = vld [vmem:[%s0 + $0x34] sm:$0xf]
  %v29 = vld [vmem:[%s0 + $0x38] sm:$0xf]
  %v30 = vld [vmem:[%s0 + $0x3c] sm:$0xf]
  %v31 = vld [vmem:[%s0 + $0x40] sm:$0xf]
  %v32 = vld [vmem:[%s0 + $0x44] sm:$0xf]
  %v33 = vld [vmem:[%s0 + $0x48] sm:$0xf]
  %v34 = vld [vmem:[%s0 + $0x4c] sm:$0xf]
  %v35 = vld [vmem:[%s0 + $0x50] sm:$0xf]
  %v36 = vld [vmem:[%s0 + $0x54] sm:$0xf]
  %v37 = vld [vmem:[%s0 + $0x58] sm:$0xf]
  %v38 = vld [vmem:[%s0 + $0x5c] sm:$0xf]
  %v39 = vld [vmem:[%s0 + $0x60] sm:$0xf]
  %v40 = vld [vmem:[%s0 + $0x64] sm:$0xf]
  %v41 = vld [vmem:[%s0 + $0x68] sm:$0xf]
  %v42 = vld [vmem:[%s0 + $0x6c] sm:$0xf]
  %v43 = vld [vmem:[%s0 + $0x70] sm:$0xf]
  %v44 = vld [vmem:[%s0 + $0x74] sm:$0xf]
  %v45 = vld [vmem:[%s0 + $0x78] sm:$0xf]
  %v46 = vld [vmem:[%s0 + $0x7c] sm:$0xf]
  %v47 = vld [vmem:[%s0 + $0x80] sm:$0xf]
  %v48 = vld [vmem:[%s0 + $0x84] sm:$0xf]
  %v49 = vld [vmem:[%s0 + $0x88] sm:$0xf]
  %v50 = vld [vmem:[%s0 + $0x8c] sm:$0xf]
  %v51 = vld [vmem:[%s0 + $0x90] sm:$0xf]
  %v52 = vld [vmem:[%s0 + $0x94] sm:$0xf]
  %v53 = vld [vmem:[%s0 + $0x98] sm:$0xf]
  %v54 = vld [vmem:[%s0 + $0x9c] sm:$0xf]
  %v55 = vld [vmem:[%s0 + $0xa0] sm:$0xf]
  %v56 = vld [vmem:[%s0 + $0xa4] sm:$0xf]
  %v57 = vld [vmem:[%s0 + $0xa8] sm:$0xf]
  %v58 = vld [vmem:[%s0 + $0xac] sm:$0xf]
  %v59 = vld [vmem:[%s0 + $0xb0] sm:$0xf]
  %v60 = vld [vmem:[%s0 + $0xb4] sm:$0xf]
  %v61 = vld [vmem:[%s0 + $0xb8] sm:$0xf]
  %v62 = vld [vmem:[%s0 + $0xbc] sm:$0xf]
  %v63 = vld [vmem:[%s0 + $0xc0] sm:$0xf]
  %v64 = vld [vmem:[%s0 + $0xc4] sm:$0xf]
  %v65 = vld [vmem:[%s0 + $0xc8] sm:$0xf]
  %v66 = vld [vmem:[%s0 + $0xcc] sm:$0xf]
  %v67 = vld [vmem:[%s0 + $0xd0] sm:$0xf]
  %v68 = vld [vmem:[%s0 + $0xd4] sm:$0xf]
  %v69 = vld [vmem:[%s0 + $0xd8] sm:$0xf]
  %v70 = vld [vmem:[%s0 + $0xdc] sm:$0xf]
  %v71 = vld [vmem:[%s0 + $0xe0] sm:$0xf]
  %v72 = vld [vmem:[%s0 + $0xe4] sm:$0xf]
  %v73 = vld [vmem:[%s0 + $0xe8] sm:$0xf]
  %v74 = vld [vmem:[%s0 + $0xec] sm:$0xf]
  %v75 = vld [vmem:[%s0 + $0xf0] sm:$0xf]
  %v76 = vld [vmem:[%s0 + $0xf4] sm:$0xf]
  %v77 = vld [vmem:[%s0 + $0xf8] sm:$0xf]
  %v78 = vld [vmem:[%s0 + $0xfc] sm:$0xf]
  %v79 = vld [vmem:[%s1] sm:$0xf]
  %v80 = vld [vmem:[%s1 + $0x4] sm:$0xf]
  %v81 = vld [vmem:[%s1 + $0x8] sm:$0xf]
  %v82 = vld [vmem:[%s1 + $0xc] sm:$0xf]
  %v83 = vld [vmem:[%s1 + $0x10] sm:$0xf]
  %v84 = vld [vmem:[%s1 + $0x14] sm:$0xf]
  %v149 = vunpack.c.l.b16 %v15
  %v150 = vunpack.c.l.b16 %v16
  %v151 = vunpack.c.l.b16 %v17
  %v152 = vunpack.c.l.b16 %v18
  %v153 = vunpack.c.l.b16 %v19
  %v154 = vunpack.c.l.b16 %v20
  %v155 = vunpack.c.l.b16 %v21
  %v156 = vunpack.c.l.b16 %v22
  %v157 = vunpack.c.l.b16 %v23
  %v158 = vunpack.c.l.b16 %v24
  %v159 = vunpack.c.l.b16 %v25
  %v160 = vunpack.c.l.b16 %v26
  %v161 = vunpack.c.l.b16 %v27
  %v162 = vunpack.c.l.b16 %v28
  %v163 = vunpack.c.l.b16 %v29
  %v164 = vunpack.c.l.b16 %v30
  %v165 = vunpack.c.l.b16 %v31
  %v166 = vunpack.c.l.b16 %v32
  %v167 = vunpack.c.l.b16 %v33
  %v168 = vunpack.c.l.b16 %v34
  %v169 = vunpack.c.l.b16 %v35
  %v170 = vunpack.c.l.b16 %v36
  %v171 = vunpack.c.l.b16 %v37
  %v172 = vunpack.c.l.b16 %v38
  %v173 = vunpack.c.l.b16 %v39
  %v174 = vunpack.c.l.b16 %v40
  %v175 = vunpack.c.l.b16 %v41
  %v176 = vunpack.c.l.b16 %v42
  %v177 = vunpack.c.l.b16 %v43
  %v178 = vunpack.c.l.b16 %v44
  %v179 = vunpack.c.l.b16 %v45
  %v180 = vunpack.c.l.b16 %v46
  %v181 = vunpack.c.l.b16 %v47
  %v182 = vunpack.c.l.b16 %v48
  %v183 = vunpack.c.l.b16 %v49
  %v184 = vunpack.c.l.b16 %v50
  %v185 = vunpack.c.l.b16 %v51
  %v186 = vunpack.c.l.b16 %v52
  %v187 = vunpack.c.l.b16 %v53
  %v188 = vunpack.c.l.b16 %v54
  %v189 = vunpack.c.l.b16 %v55
  %v190 = vunpack.c.l.b16 %v56
  %v191 = vunpack.c.l.b16 %v57
  %v192 = vunpack.c.l.b16 %v58
  %v193 = vunpack.c.l.b16 %v59
  %v194 = vunpack.c.l.b16 %v60
  %v195 = vunpack.c.l.b16 %v61
  %v196 = vunpack.c.l.b16 %v62
  %v197 = vunpack.c.l.b16 %v63
  %v198 = vunpack.c.l.b16 %v64
  %v199 = vunpack.c.l.b16 %v65
  %v200 = vunpack.c.l.b16 %v66
  %v201 = vunpack.c.l.b16 %v67
  %v202 = vunpack.c.l.b16 %v68
  %v203 = vunpack.c.l.b16 %v69
  %v204 = vunpack.c.l.b16 %v70
  %v205 = vunpack.c.l.b16 %v71
  %v206 = vunpack.c.l.b16 %v72
  %v207 = vunpack.c.l.b16 %v73
  %v208 = vunpack.c.l.b16 %v74
  %v209 = vunpack.c.l.b16 %v75
  %v210 = vunpack.c.l.b16 %v76
  %v211 = vunpack.c.l.b16 %v77
  %v212 = vunpack.c.l.b16 %v78
  %v213 = vpack.c.b16 %v150, %v149
  %v214 = vpack.c.b16 %v152, %v151
  %v215 = vpack.c.b16 %v154, %v153
  %v216 = vpack.c.b16 %v156, %v155
  %v217 = vpack.c.b16 %v158, %v157
  %v218 = vpack.c.b16 %v160, %v159
  %v219 = vpack.c.b16 %v162, %v161
  %v220 = vpack.c.b16 %v164, %v163
  %v221 = vpack.c.b16 %v166, %v165
  %v222 = vpack.c.b16 %v168, %v167
  %v223 = vpack.c.b16 %v170, %v169
  %v224 = vpack.c.b16 %v172, %v171
  %v225 = vpack.c.b16 %v174, %v173
  %v226 = vpack.c.b16 %v176, %v175
  %v227 = vpack.c.b16 %v178, %v177
  %v228 = vpack.c.b16 %v180, %v179
  %v229 = vpack.c.b16 %v182, %v181
  %v230 = vpack.c.b16 %v184, %v183
  %v231 = vpack.c.b16 %v186, %v185
  %v232 = vpack.c.b16 %v188, %v187
  %v233 = vpack.c.b16 %v190, %v189
  %v234 = vpack.c.b16 %v192, %v191
  %v235 = vpack.c.b16 %v194, %v193
  %v236 = vpack.c.b16 %v196, %v195
  %v237 = vpack.c.b16 %v198, %v197
  %v238 = vpack.c.b16 %v200, %v199
  %v239 = vpack.c.b16 %v202, %v201
  %v240 = vpack.c.b16 %v204, %v203
  %v241 = vpack.c.b16 %v206, %v205
  %v242 = vpack.c.b16 %v208, %v207
  %v243 = vpack.c.b16 %v210, %v209
  %v244 = vpack.c.b16 %v212, %v211
  %v251 = vunpack.c.l.b16 %v79
  %v252 = vunpack.c.l.b16 %v80
  %v253 = vunpack.c.l.b16 %v81
  %v254 = vunpack.c.l.b16 %v82
  %v255 = vunpack.c.l.b16 %v83
  %v256 = vunpack.c.l.b16 %v84
  %v257 = vpack.c.b16 %v252, %v251
  %v258 = vpack.c.b16 %v254, %v253
  %v259 = vpack.c.b16 %v256, %v255
  %vm263 = vcmask 392192
  %v265 = vsel %vm263, %v213, 0
  %v268 = vsel %vm263, %v214, 0
  %v271 = vsel %vm263, %v215, 0
  %v274 = vsel %vm263, %v216, 0
  %v277 = vsel %vm263, %v217, 0
  %v280 = vsel %vm263, %v218, 0
  %v283 = vsel %vm263, %v219, 0
  %v286 = vsel %vm263, %v220, 0
  %v289 = vsel %vm263, %v221, 0
  %v292 = vsel %vm263, %v222, 0
  %v295 = vsel %vm263, %v223, 0
  %v298 = vsel %vm263, %v224, 0
  %v301 = vsel %vm263, %v225, 0
  %v304 = vsel %vm263, %v226, 0
  %v307 = vsel %vm263, %v227, 0
  %v310 = vsel %vm263, %v228, 0
  %v313 = vsel %vm263, %v229, 0
  %v316 = vsel %vm263, %v230, 0
  %v319 = vsel %vm263, %v231, 0
  %v322 = vsel %vm263, %v232, 0
  %v325 = vsel %vm263, %v233, 0
  %v328 = vsel %vm263, %v234, 0
  %v331 = vsel %vm263, %v235, 0
  %v334 = vsel %vm263, %v236, 0
  %v337 = vsel %vm263, %v237, 0
  %v340 = vsel %vm263, %v238, 0
  %v343 = vsel %vm263, %v239, 0
  %v346 = vsel %vm263, %v240, 0
  %v349 = vsel %vm263, %v241, 0
  %v352 = vsel %vm263, %v242, 0
  %v355 = vsel %vm263, %v243, 0
  %v358 = vsel %vm263, %v244, 0
  %360 = vmatprep.subr.bf16.mxu0 0
  %361 = vmatpush1.bf16.msra.mxu0 0
  %362 = vmatprep.subr.bf16.mxu0 0
  %363 = vmatpush1.bf16.msra.mxu0 0
  %364 = vmatprep.subr.bf16.mxu0 0
  %365 = vmatpush1.bf16.msra.mxu0 0
  %366 = vmatprep.subr.bf16.mxu0 0
  %367 = vmatpush1.bf16.msra.mxu0 0
  %368 = vmatprep.subr.bf16.mxu0 0
  %369 = vmatpush1.bf16.msra.mxu0 0
  %370 = vmatprep.subr.bf16.mxu0 0
  %371 = vmatpush1.bf16.msra.mxu0 %v259
  %372 = vmatprep.subr.bf16.mxu0 0
  %373 = vmatpush1.bf16.msra.mxu0 %v258
  %374 = vmatprep.subr.bf16.mxu0 0
  %375 = vmatpush1.bf16.msra.mxu0 %v257
  %376 = vmatprep.subr.bf16.mxu0 0
  %377 = vmatpush2.bf16.msra.mxu0 0
  %378 = vmatprep.subr.bf16.mxu0 0
  %379 = vmatpush2.bf16.msra.mxu0 0
  %380 = vmatprep.subr.bf16.mxu0 0
  %381 = vmatpush2.bf16.msra.mxu0 0
  %382 = vmatprep.subr.bf16.mxu0 0
  %383 = vmatpush2.bf16.msra.mxu0 0
  %384 = vmatprep.subr.bf16.mxu0 0
  %385 = vmatpush2.bf16.msra.mxu0 0
  %386 = vmatprep.subr.bf16.mxu0 0
  %387 = vmatpush2.bf16.msra.mxu0 0
  %388 = vmatprep.subr.bf16.mxu0 0
  %389 = vmatpush2.bf16.msra.mxu0 0
  %390 = vmatprep.subr.bf16.mxu0 0
  %391 = vmatpush2.bf16.msra.mxu0 0
  %392 = vmatprep.mubr.bf16.mxu0 0
  %393 = vmatmul.mubr.bf16.gmra.mxu0 %v265
  %v394 = vpop.f32.mrf.mxu0
  %v395 = vadd.f32 0.0, %v394
  %v396 = vpop.f32.mrf.mxu0
  %v397 = vpop.f32.mrf.mxu0
  %v398 = vadd.f32 0.0, %v397
  %v399 = vpop.f32.mrf.mxu0
  %400 = vmatprep.mubr.bf16.mxu0 0
  %401 = vmatmul.mubr.bf16.gmra.mxu0 %v268
  %v402 = vpop.f32.mrf.mxu0
  %v403 = vadd.f32 0.0, %v402
  %v404 = vpop.f32.mrf.mxu0
  %v405 = vpop.f32.mrf.mxu0
  %v406 = vadd.f32 0.0, %v405
  %v407 = vpop.f32.mrf.mxu0
  %408 = vmatprep.mubr.bf16.mxu0 0
  %409 = vmatmul.mubr.bf16.gmra.mxu0 %v271
  %v410 = vpop.f32.mrf.mxu0
  %v411 = vadd.f32 0.0, %v410
  %v412 = vpop.f32.mrf.mxu0
  %v413 = vpop.f32.mrf.mxu0
  %v414 = vadd.f32 0.0, %v413
  %v415 = vpop.f32.mrf.mxu0
  %416 = vmatprep.mubr.bf16.mxu0 0
  %417 = vmatmul.mubr.bf16.gmra.mxu0 %v274
  %v418 = vpop.f32.mrf.mxu0
  %v419 = vadd.f32 0.0, %v418
  %v420 = vpop.f32.mrf.mxu0
  %v421 = vpop.f32.mrf.mxu0
  %v422 = vadd.f32 0.0, %v421
  %v423 = vpop.f32.mrf.mxu0
  %424 = vmatprep.mubr.bf16.mxu0 0
  %425 = vmatmul.mubr.bf16.gmra.mxu0 %v277
  %v426 = vpop.f32.mrf.mxu0
  %v427 = vadd.f32 0.0, %v426
  %v428 = vpop.f32.mrf.mxu0
  %v429 = vpop.f32.mrf.mxu0
  %v430 = vadd.f32 0.0, %v429
  %v431 = vpop.f32.mrf.mxu0
  %432 = vmatprep.mubr.bf16.mxu0 0
  %433 = vmatmul.mubr.bf16.gmra.mxu0 %v280
  %v434 = vpop.f32.mrf.mxu0
  %v435 = vadd.f32 0.0, %v434
  %v436 = vpop.f32.mrf.mxu0
  %v437 = vpop.f32.mrf.mxu0
  %v438 = vadd.f32 0.0, %v437
  %v439 = vpop.f32.mrf.mxu0
  %440 = vmatprep.mubr.bf16.mxu0 0
  %441 = vmatmul.mubr.bf16.gmra.mxu0 %v283
  %v442 = vpop.f32.mrf.mxu0
  %v443 = vadd.f32 0.0, %v442
  %v444 = vpop.f32.mrf.mxu0
  %v445 = vpop.f32.mrf.mxu0
  %v446 = vadd.f32 0.0, %v445
  %v447 = vpop.f32.mrf.mxu0
  %448 = vmatprep.mubr.bf16.mxu0 0
  %449 = vmatmul.mubr.bf16.gmra.mxu0 %v286
  %v450 = vpop.f32.mrf.mxu0
  %v451 = vadd.f32 0.0, %v450
  %v452 = vpop.f32.mrf.mxu0
  %v453 = vpop.f32.mrf.mxu0
  %v454 = vadd.f32 0.0, %v453
  %v455 = vpop.f32.mrf.mxu0
  %456 = vmatprep.mubr.bf16.mxu0 0
  %457 = vmatmul.mubr.bf16.gmra.mxu0 %v289
  %v458 = vpop.f32.mrf.mxu0
  %v459 = vadd.f32 0.0, %v458
  %v460 = vpop.f32.mrf.mxu0
  %v461 = vpop.f32.mrf.mxu0
  %v462 = vadd.f32 0.0, %v461
  %v463 = vpop.f32.mrf.mxu0
  %464 = vmatprep.mubr.bf16.mxu0 0
  %465 = vmatmul.mubr.bf16.gmra.mxu0 %v292
  %v466 = vpop.f32.mrf.mxu0
  %v467 = vadd.f32 0.0, %v466
  %v468 = vpop.f32.mrf.mxu0
  %v469 = vpop.f32.mrf.mxu0
  %v470 = vadd.f32 0.0, %v469
  %v471 = vpop.f32.mrf.mxu0
  %472 = vmatprep.mubr.bf16.mxu0 0
  %473 = vmatmul.mubr.bf16.gmra.mxu0 %v295
  %v474 = vpop.f32.mrf.mxu0
  %v475 = vadd.f32 0.0, %v474
  %v476 = vpop.f32.mrf.mxu0
  %v477 = vpop.f32.mrf.mxu0
  %v478 = vadd.f32 0.0, %v477
  %v479 = vpop.f32.mrf.mxu0
  %480 = vmatprep.mubr.bf16.mxu0 0
  %481 = vmatmul.mubr.bf16.gmra.mxu0 %v298
  %v482 = vpop.f32.mrf.mxu0
  %v483 = vadd.f32 0.0, %v482
  %v484 = vpop.f32.mrf.mxu0
  %v485 = vpop.f32.mrf.mxu0
  %v486 = vadd.f32 0.0, %v485
  %v487 = vpop.f32.mrf.mxu0
  %488 = vmatprep.mubr.bf16.mxu0 0
  %489 = vmatmul.mubr.bf16.gmra.mxu0 %v301
  %v490 = vpop.f32.mrf.mxu0
  %v491 = vadd.f32 0.0, %v490
  %v492 = vpop.f32.mrf.mxu0
  %v493 = vpop.f32.mrf.mxu0
  %v494 = vadd.f32 0.0, %v493
  %v495 = vpop.f32.mrf.mxu0
  %496 = vmatprep.mubr.bf16.mxu0 0
  %497 = vmatmul.mubr.bf16.gmra.mxu0 %v304
  %v498 = vpop.f32.mrf.mxu0
  %v499 = vadd.f32 0.0, %v498
  %v500 = vpop.f32.mrf.mxu0
  %v501 = vpop.f32.mrf.mxu0
  %v502 = vadd.f32 0.0, %v501
  %v503 = vpop.f32.mrf.mxu0
  %504 = vmatprep.mubr.bf16.mxu0 0
  %505 = vmatmul.mubr.bf16.gmra.mxu0 %v307
  %v506 = vpop.f32.mrf.mxu0
  %v507 = vadd.f32 0.0, %v506
  %v508 = vpop.f32.mrf.mxu0
  %v509 = vpop.f32.mrf.mxu0
  %v510 = vadd.f32 0.0, %v509
  %v511 = vpop.f32.mrf.mxu0
  %512 = vmatprep.mubr.bf16.mxu0 0
  %513 = vmatmul.mubr.bf16.gmra.mxu0 %v310
  %v514 = vpop.f32.mrf.mxu0
  %v515 = vadd.f32 0.0, %v514
  %v516 = vpop.f32.mrf.mxu0
  %v517 = vpop.f32.mrf.mxu0
  %v518 = vadd.f32 0.0, %v517
  %v519 = vpop.f32.mrf.mxu0
  %520 = vmatprep.mubr.bf16.mxu0 0
  %521 = vmatmul.mubr.bf16.gmra.mxu0 %v313
  %v522 = vpop.f32.mrf.mxu0
  %v523 = vadd.f32 0.0, %v522
  %v524 = vpop.f32.mrf.mxu0
  %v525 = vpop.f32.mrf.mxu0
  %v526 = vadd.f32 0.0, %v525
  %v527 = vpop.f32.mrf.mxu0
  %528 = vmatprep.mubr.bf16.mxu0 0
  %529 = vmatmul.mubr.bf16.gmra.mxu0 %v316
  %v530 = vpop.f32.mrf.mxu0
  %v531 = vadd.f32 0.0, %v530
  %v532 = vpop.f32.mrf.mxu0
  %v533 = vpop.f32.mrf.mxu0
  %v534 = vadd.f32 0.0, %v533
  %v535 = vpop.f32.mrf.mxu0
  %536 = vmatprep.mubr.bf16.mxu0 0
  %537 = vmatmul.mubr.bf16.gmra.mxu0 %v319
  %v538 = vpop.f32.mrf.mxu0
  %v539 = vadd.f32 0.0, %v538
  %v540 = vpop.f32.mrf.mxu0
  %v541 = vpop.f32.mrf.mxu0
  %v542 = vadd.f32 0.0, %v541
  %v543 = vpop.f32.mrf.mxu0
  %544 = vmatprep.mubr.bf16.mxu0 0
  %545 = vmatmul.mubr.bf16.gmra.mxu0 %v322
  %v546 = vpop.f32.mrf.mxu0
  %v547 = vadd.f32 0.0, %v546
  %v548 = vpop.f32.mrf.mxu0
  %v549 = vpop.f32.mrf.mxu0
  %v550 = vadd.f32 0.0, %v549
  %v551 = vpop.f32.mrf.mxu0
  %552 = vmatprep.mubr.bf16.mxu0 0
  %553 = vmatmul.mubr.bf16.gmra.mxu0 %v325
  %v554 = vpop.f32.mrf.mxu0
  %v555 = vadd.f32 0.0, %v554
  %v556 = vpop.f32.mrf.mxu0
  %v557 = vpop.f32.mrf.mxu0
  %v558 = vadd.f32 0.0, %v557
  %v559 = vpop.f32.mrf.mxu0
  %560 = vmatprep.mubr.bf16.mxu0 0
  %561 = vmatmul.mubr.bf16.gmra.mxu0 %v328
  %v562 = vpop.f32.mrf.mxu0
  %v563 = vadd.f32 0.0, %v562
  %v564 = vpop.f32.mrf.mxu0
  %v565 = vpop.f32.mrf.mxu0
  %v566 = vadd.f32 0.0, %v565
  %v567 = vpop.f32.mrf.mxu0
  %568 = vmatprep.mubr.bf16.mxu0 0
  %569 = vmatmul.mubr.bf16.gmra.mxu0 %v331
  %v570 = vpop.f32.mrf.mxu0
  %v571 = vadd.f32 0.0, %v570
  %v572 = vpop.f32.mrf.mxu0
  %v573 = vpop.f32.mrf.mxu0
  %v574 = vadd.f32 0.0, %v573
  %v575 = vpop.f32.mrf.mxu0
  %576 = vmatprep.mubr.bf16.mxu0 0
  %577 = vmatmul.mubr.bf16.gmra.mxu0 %v334
  %v578 = vpop.f32.mrf.mxu0
  %v579 = vadd.f32 0.0, %v578
  %v580 = vpop.f32.mrf.mxu0
  %v581 = vpop.f32.mrf.mxu0
  %v582 = vadd.f32 0.0, %v581
  %v583 = vpop.f32.mrf.mxu0
  %584 = vmatprep.mubr.bf16.mxu0 0
  %585 = vmatmul.mubr.bf16.gmra.mxu0 %v337
  %v586 = vpop.f32.mrf.mxu0
  %v587 = vadd.f32 0.0, %v586
  %v588 = vpop.f32.mrf.mxu0
  %v589 = vpop.f32.mrf.mxu0
  %v590 = vadd.f32 0.0, %v589
  %v591 = vpop.f32.mrf.mxu0
  %592 = vmatprep.mubr.bf16.mxu0 0
  %593 = vmatmul.mubr.bf16.gmra.mxu0 %v340
  %v594 = vpop.f32.mrf.mxu0
  %v595 = vadd.f32 0.0, %v594
  %v596 = vpop.f32.mrf.mxu0
  %v597 = vpop.f32.mrf.mxu0
  %v598 = vadd.f32 0.0, %v597
  %v599 = vpop.f32.mrf.mxu0
  %600 = vmatprep.mubr.bf16.mxu0 0
  %601 = vmatmul.mubr.bf16.gmra.mxu0 %v343
  %v602 = vpop.f32.mrf.mxu0
  %v603 = vadd.f32 0.0, %v602
  %v604 = vpop.f32.mrf.mxu0
  %v605 = vpop.f32.mrf.mxu0
  %v606 = vadd.f32 0.0, %v605
  %v607 = vpop.f32.mrf.mxu0
  %608 = vmatprep.mubr.bf16.mxu0 0
  %609 = vmatmul.mubr.bf16.gmra.mxu0 %v346
  %v610 = vpop.f32.mrf.mxu0
  %v611 = vadd.f32 0.0, %v610
  %v612 = vpop.f32.mrf.mxu0
  %v613 = vpop.f32.mrf.mxu0
  %v614 = vadd.f32 0.0, %v613
  %v615 = vpop.f32.mrf.mxu0
  %616 = vmatprep.mubr.bf16.mxu0 0
  %617 = vmatmul.mubr.bf16.gmra.mxu0 %v349
  %v618 = vpop.f32.mrf.mxu0
  %v619 = vadd.f32 0.0, %v618
  %v620 = vpop.f32.mrf.mxu0
  %v621 = vpop.f32.mrf.mxu0
  %v622 = vadd.f32 0.0, %v621
  %v623 = vpop.f32.mrf.mxu0
  %624 = vmatprep.mubr.bf16.mxu0 0
  %625 = vmatmul.mubr.bf16.gmra.mxu0 %v352
  %v626 = vpop.f32.mrf.mxu0
  %v627 = vadd.f32 0.0, %v626
  %v628 = vpop.f32.mrf.mxu0
  %v629 = vpop.f32.mrf.mxu0
  %v630 = vadd.f32 0.0, %v629
  %v631 = vpop.f32.mrf.mxu0
  %632 = vmatprep.mubr.bf16.mxu0 0
  %633 = vmatmul.mubr.bf16.gmra.mxu0 %v355
  %v634 = vpop.f32.mrf.mxu0
  %v635 = vadd.f32 0.0, %v634
  %v636 = vpop.f32.mrf.mxu0
  %v637 = vpop.f32.mrf.mxu0
  %v638 = vadd.f32 0.0, %v637
  %v639 = vpop.f32.mrf.mxu0
  %640 = vmatprep.mubr.bf16.mxu0 0
  %641 = vmatmul.mubr.bf16.gmra.mxu0 %v358
  %v642 = vpop.f32.mrf.mxu0
  %v643 = vadd.f32 0.0, %v642
  %v644 = vpop.f32.mrf.mxu0
  %v645 = vpop.f32.mrf.mxu0
  %v646 = vadd.f32 0.0, %v645
  %v647 = vpop.f32.mrf.mxu0
  %648 = vdwg.mxu0
  %v649 = vmax.f32 %v395, 0.0
  %v650 = vmax.f32 %v398, 0.0
  %v651 = vmax.f32 %v403, 0.0
  %v652 = vmax.f32 %v406, 0.0
  %v653 = vmax.f32 %v411, 0.0
  %v654 = vmax.f32 %v414, 0.0
  %v655 = vmax.f32 %v419, 0.0
  %v656 = vmax.f32 %v422, 0.0
  %v657 = vmax.f32 %v427, 0.0
  %v658 = vmax.f32 %v430, 0.0
  %v659 = vmax.f32 %v435, 0.0
  %v660 = vmax.f32 %v438, 0.0
  %v661 = vmax.f32 %v443, 0.0
  %v662 = vmax.f32 %v446, 0.0
  %v663 = vmax.f32 %v451, 0.0
  %v664 = vmax.f32 %v454, 0.0
  %v665 = vmax.f32 %v459, 0.0
  %v666 = vmax.f32 %v462, 0.0
  %v667 = vmax.f32 %v467, 0.0
  %v668 = vmax.f32 %v470, 0.0
  %v669 = vmax.f32 %v475, 0.0
  %v670 = vmax.f32 %v478, 0.0
  %v671 = vmax.f32 %v483, 0.0
  %v672 = vmax.f32 %v486, 0.0
  %v673 = vmax.f32 %v491, 0.0
  %v674 = vmax.f32 %v494, 0.0
  %v675 = vmax.f32 %v499, 0.0
  %v676 = vmax.f32 %v502, 0.0
  %v677 = vmax.f32 %v507, 0.0
  %v678 = vmax.f32 %v510, 0.0
  %v679 = vmax.f32 %v515, 0.0
  %v680 = vmax.f32 %v518, 0.0
  %v681 = vmax.f32 %v523, 0.0
  %v682 = vmax.f32 %v526, 0.0
  %v683 = vmax.f32 %v531, 0.0
  %v684 = vmax.f32 %v534, 0.0
  %v685 = vmax.f32 %v539, 0.0
  %v686 = vmax.f32 %v542, 0.0
  %v687 = vmax.f32 %v547, 0.0
  %v688 = vmax.f32 %v550, 0.0
  %v689 = vmax.f32 %v555, 0.0
  %v690 = vmax.f32 %v558, 0.0
  %v691 = vmax.f32 %v563, 0.0
  %v692 = vmax.f32 %v566, 0.0
  %v693 = vmax.f32 %v571, 0.0
  %v694 = vmax.f32 %v574, 0.0
  %v695 = vmax.f32 %v579, 0.0
  %v696 = vmax.f32 %v582, 0.0
  %v697 = vmax.f32 %v587, 0.0
  %v698 = vmax.f32 %v590, 0.0
  %v699 = vmax.f32 %v595, 0.0
  %v700 = vmax.f32 %v598, 0.0
  %v701 = vmax.f32 %v603, 0.0
  %v702 = vmax.f32 %v606, 0.0
  %v703 = vmax.f32 %v611, 0.0
  %v704 = vmax.f32 %v614, 0.0
  %v705 = vmax.f32 %v619, 0.0
  %v706 = vmax.f32 %v622, 0.0
  %v707 = vmax.f32 %v627, 0.0
  %v708 = vmax.f32 %v630, 0.0
  %v709 = vmax.f32 %v635, 0.0
  %v710 = vmax.f32 %v638, 0.0
  %v711 = vmax.f32 %v643, 0.0
  %v712 = vmax.f32 %v646, 0.0
  %v713 = vlaneseq
  %v714 = vshrl.u32 %v713, 7
  %v715 = vlaneseq
  %v716 = vand.u32 %v715, 127
  %v717 = vadd.s32 %v716, 128
  %v718 = vadd.s32 %v716, 256
  %v719 = vadd.s32 %v716, 384
  %v720 = vmul.u32 %v714, 256
  %vm721 = vcmp.ge.s32.totalorder %v716, %v720
  %vm722 = vcmp.ge.s32.totalorder %v717, %v720
  %vm723 = vcmp.ge.s32.totalorder %v718, %v720
  %vm724 = vcmp.ge.s32.totalorder %v719, %v720
  %v725 = vadd.s32 %v714, 1
  %v726 = vmul.u32 %v725, 256
  %vm727 = vcmp.lt.s32.totalorder %v716, %v726
  %vm728 = vcmp.lt.s32.totalorder %v717, %v726
  %vm729 = vcmp.lt.s32.totalorder %v718, %v726
  %vm730 = vcmp.lt.s32.totalorder %v719, %v726
  %vm731 = vmand %vm721, %vm727
  %vm732 = vmand %vm722, %vm728
  %vm733 = vmand %vm723, %vm729
  %vm734 = vmand %vm724, %vm730
  %v735 = vsel %vm731, 0.00390625, 0.0
  %v736 = vsel %vm732, 0.00390625, 0.0
  %v737 = vsel %vm733, 0.00390625, 0.0
  %v738 = vsel %vm734, 0.00390625, 0.0
  %739 = vmatprep.subr.mxu0 0.0
  %740 = vmatpush1.msra.mxu0 %v664
  %741 = vmatprep.subr.mxu0 0.0
  %742 = vmatpush1.msra.mxu0 %v663
  %743 = vmatprep.subr.mxu0 0.0
  %744 = vmatpush1.msra.mxu0 %v662
  %745 = vmatprep.subr.mxu0 0.0
  %746 = vmatpush1.msra.mxu0 %v661
  %747 = vmatprep.subr.mxu0 0.0
  %748 = vmatpush1.msra.mxu0 %v660
  %749 = vmatprep.subr.mxu0 0.0
  %750 = vmatpush1.msra.mxu0 %v659
  %751 = vmatprep.subr.mxu0 0.0
  %752 = vmatpush1.msra.mxu0 %v658
  %753 = vmatprep.subr.mxu0 0.0
  %754 = vmatpush1.msra.mxu0 %v657
  %755 = vmatprep.subr.mxu0 0.0
  %756 = vmatpush1.msra.mxu0 %v656
  %757 = vmatprep.subr.mxu0 0.0
  %758 = vmatpush1.msra.mxu0 %v655
  %759 = vmatprep.subr.mxu0 0.0
  %760 = vmatpush1.msra.mxu0 %v654
  %761 = vmatprep.subr.mxu0 0.0
  %762 = vmatpush1.msra.mxu0 %v653
  %763 = vmatprep.subr.mxu0 0.0
  %764 = vmatpush1.msra.mxu0 %v652
  %765 = vmatprep.subr.mxu0 0.0
  %766 = vmatpush1.msra.mxu0 %v651
  %767 = vmatprep.subr.mxu0 0.0
  %768 = vmatpush1.msra.mxu0 %v650
  %769 = vmatprep.subr.mxu0 0.0
  %770 = vmatpush1.msra.mxu0 %v649
  %771 = vmatprep.subr.mxu0 0.0
  %772 = vmatpush2.msra.mxu0 %v680
  %773 = vmatprep.subr.mxu0 0.0
  %774 = vmatpush2.msra.mxu0 %v679
  %775 = vmatprep.subr.mxu0 0.0
  %776 = vmatpush2.msra.mxu0 %v678
  %777 = vmatprep.subr.mxu0 0.0
  %778 = vmatpush2.msra.mxu0 %v677
  %779 = vmatprep.subr.mxu0 0.0
  %780 = vmatpush2.msra.mxu0 %v676
  %781 = vmatprep.subr.mxu0 0.0
  %782 = vmatpush2.msra.mxu0 %v675
  %783 = vmatprep.subr.mxu0 0.0
  %784 = vmatpush2.msra.mxu0 %v674
  %785 = vmatprep.subr.mxu0 0.0
  %786 = vmatpush2.msra.mxu0 %v673
  %787 = vmatprep.subr.mxu0 0.0
  %788 = vmatpush2.msra.mxu0 %v672
  %789 = vmatprep.subr.mxu0 0.0
  %790 = vmatpush2.msra.mxu0 %v671
  %791 = vmatprep.subr.mxu0 0.0
  %792 = vmatpush2.msra.mxu0 %v670
  %793 = vmatprep.subr.mxu0 0.0
  %794 = vmatpush2.msra.mxu0 %v669
  %795 = vmatprep.subr.mxu0 0.0
  %796 = vmatpush2.msra.mxu0 %v668
  %797 = vmatprep.subr.mxu0 0.0
  %798 = vmatpush2.msra.mxu0 %v667
  %799 = vmatprep.subr.mxu0 0.0
  %800 = vmatpush2.msra.mxu0 %v666
  %801 = vmatprep.subr.mxu0 0.0
  %802 = vmatpush2.msra.mxu0 %v665
  %803 = vmatprep.mubr.f32.mxu0 %v736
  %804 = vmatmul.mubr.f32.gmra.mxu0 %v735
  %v805 = vpop.f32.mrf.mxu0
  %v806 = vadd.f32 0.0, %v805
  %v807 = vpop.f32.mrf.mxu0
  %808 = vdwg.mxu0
  %809 = vmatprep.subr.mxu0 0.0
  %810 = vmatpush1.msra.mxu0 %v696
  %811 = vmatprep.subr.mxu0 0.0
  %812 = vmatpush1.msra.mxu0 %v695
  %813 = vmatprep.subr.mxu0 0.0
  %814 = vmatpush1.msra.mxu0 %v694
  %815 = vmatprep.subr.mxu0 0.0
  %816 = vmatpush1.msra.mxu0 %v693
  %817 = vmatprep.subr.mxu0 0.0
  %818 = vmatpush1.msra.mxu0 %v692
  %819 = vmatprep.subr.mxu0 0.0
  %820 = vmatpush1.msra.mxu0 %v691
  %821 = vmatprep.subr.mxu0 0.0
  %822 = vmatpush1.msra.mxu0 %v690
  %823 = vmatprep.subr.mxu0 0.0
  %824 = vmatpush1.msra.mxu0 %v689
  %825 = vmatprep.subr.mxu0 0.0
  %826 = vmatpush1.msra.mxu0 %v688
  %827 = vmatprep.subr.mxu0 0.0
  %828 = vmatpush1.msra.mxu0 %v687
  %829 = vmatprep.subr.mxu0 0.0
  %830 = vmatpush1.msra.mxu0 %v686
  %831 = vmatprep.subr.mxu0 0.0
  %832 = vmatpush1.msra.mxu0 %v685
  %833 = vmatprep.subr.mxu0 0.0
  %834 = vmatpush1.msra.mxu0 %v684
  %835 = vmatprep.subr.mxu0 0.0
  %836 = vmatpush1.msra.mxu0 %v683
  %837 = vmatprep.subr.mxu0 0.0
  %838 = vmatpush1.msra.mxu0 %v682
  %839 = vmatprep.subr.mxu0 0.0
  %840 = vmatpush1.msra.mxu0 %v681
  %841 = vmatprep.subr.mxu0 0.0
  %842 = vmatpush2.msra.mxu0 %v712
  %843 = vmatprep.subr.mxu0 0.0
  %844 = vmatpush2.msra.mxu0 %v711
  %845 = vmatprep.subr.mxu0 0.0
  %846 = vmatpush2.msra.mxu0 %v710
  %847 = vmatprep.subr.mxu0 0.0
  %848 = vmatpush2.msra.mxu0 %v709
  %849 = vmatprep.subr.mxu0 0.0
  %850 = vmatpush2.msra.mxu0 %v708
  %851 = vmatprep.subr.mxu0 0.0
  %852 = vmatpush2.msra.mxu0 %v707
  %853 = vmatprep.subr.mxu0 0.0
  %854 = vmatpush2.msra.mxu0 %v706
  %855 = vmatprep.subr.mxu0 0.0
  %856 = vmatpush2.msra.mxu0 %v705
  %857 = vmatprep.subr.mxu0 0.0
  %858 = vmatpush2.msra.mxu0 %v704
  %859 = vmatprep.subr.mxu0 0.0
  %860 = vmatpush2.msra.mxu0 %v703
  %861 = vmatprep.subr.mxu0 0.0
  %862 = vmatpush2.msra.mxu0 %v702
  %863 = vmatprep.subr.mxu0 0.0
  %864 = vmatpush2.msra.mxu0 %v701
  %865 = vmatprep.subr.mxu0 0.0
  %866 = vmatpush2.msra.mxu0 %v700
  %867 = vmatprep.subr.mxu0 0.0
  %868 = vmatpush2.msra.mxu0 %v699
  %869 = vmatprep.subr.mxu0 0.0
  %870 = vmatpush2.msra.mxu0 %v698
  %871 = vmatprep.subr.mxu0 0.0
  %872 = vmatpush2.msra.mxu0 %v697
  %873 = vmatprep.mubr.f32.mxu0 %v738
  %874 = vmatmul.mubr.f32.gmra.mxu0 %v737
  %v875 = vpop.f32.mrf.mxu0
  %v876 = vadd.f32 %v806, %v875
  %v877 = vpop.f32.mrf.mxu0
  %878 = vdwg.mxu0
  %v879 = vld [vmem:[%s2] sm:$0xff]
  %v880 = vld [vmem:[%s2 + $0x8] sm:$0xff]
  %v881 = vld [vmem:[%s2 + $0x10] sm:$0xff]
  %v882 = vld [vmem:[%s2 + $0x18] sm:$0xff]
  %v883 = vld [vmem:[%s2 + $0x20] sm:$0xff]
  %v884 = vld [vmem:[%s2 + $0x28] sm:$0xff]
  %v885 = vld [vmem:[%s2 + $0x30] sm:$0xff]
  %v886 = vld [vmem:[%s2 + $0x38] sm:$0xff]
  %v887 = vld [vmem:[%s2 + $0x40] sm:$0xff]
  %v888 = vld [vmem:[%s2 + $0x48] sm:$0xff]
  %v889 = vld [vmem:[%s2 + $0x50] sm:$0xff]
  %v890 = vld [vmem:[%s2 + $0x58] sm:$0xff]
  %v891 = vld [vmem:[%s2 + $0x60] sm:$0xff]
  %v892 = vld [vmem:[%s2 + $0x68] sm:$0xff]
  %v893 = vld [vmem:[%s2 + $0x70] sm:$0xff]
  %v894 = vld [vmem:[%s2 + $0x78] sm:$0xff]
  %895 = vmatprep.subr.mxu0 0.0
  %896 = vmatpush1.msra.mxu0 %v894
  %897 = vmatprep.subr.mxu0 0.0
  %898 = vmatpush1.msra.mxu0 %v893
  %899 = vmatprep.subr.mxu0 0.0
  %900 = vmatpush1.msra.mxu0 %v892
  %901 = vmatprep.subr.mxu0 0.0
  %902 = vmatpush1.msra.mxu0 %v891
  %903 = vmatprep.subr.mxu0 0.0
  %904 = vmatpush1.msra.mxu0 %v890
  %905 = vmatprep.subr.mxu0 0.0
  %906 = vmatpush1.msra.mxu0 %v889
  %907 = vmatprep.subr.mxu0 0.0
  %908 = vmatpush1.msra.mxu0 %v888
  %909 = vmatprep.subr.mxu0 0.0
  %910 = vmatpush1.msra.mxu0 %v887
  %911 = vmatprep.subr.mxu0 0.0
  %912 = vmatpush1.msra.mxu0 %v886
  %913 = vmatprep.subr.mxu0 0.0
  %914 = vmatpush1.msra.mxu0 %v885
  %915 = vmatprep.subr.mxu0 0.0
  %916 = vmatpush1.msra.mxu0 %v884
  %917 = vmatprep.subr.mxu0 0.0
  %918 = vmatpush1.msra.mxu0 %v883
  %919 = vmatprep.subr.mxu0 0.0
  %920 = vmatpush1.msra.mxu0 %v882
  %921 = vmatprep.subr.mxu0 0.0
  %922 = vmatpush1.msra.mxu0 %v881
  %923 = vmatprep.subr.mxu0 0.0
  %924 = vmatpush1.msra.mxu0 %v880
  %925 = vmatprep.subr.mxu0 0.0
  %926 = vmatpush1.msra.mxu0 %v879
  %927 = vmatprep.subr.mxu0 0.0
  %928 = vmatpush2.msra.mxu0 0.0
  %929 = vmatprep.subr.mxu0 0.0
  %930 = vmatpush2.msra.mxu0 0.0
  %931 = vmatprep.subr.mxu0 0.0
  %932 = vmatpush2.msra.mxu0 0.0
  %933 = vmatprep.subr.mxu0 0.0
  %934 = vmatpush2.msra.mxu0 0.0
  %935 = vmatprep.subr.mxu0 0.0
  %936 = vmatpush2.msra.mxu0 0.0
  %937 = vmatprep.subr.mxu0 0.0
  %938 = vmatpush2.msra.mxu0 0.0
  %939 = vmatprep.subr.mxu0 0.0
  %940 = vmatpush2.msra.mxu0 0.0
  %941 = vmatprep.subr.mxu0 0.0
  %942 = vmatpush2.msra.mxu0 0.0
  %943 = vmatprep.subr.mxu0 0.0
  %944 = vmatpush2.msra.mxu0 0.0
  %945 = vmatprep.subr.mxu0 0.0
  %946 = vmatpush2.msra.mxu0 0.0
  %947 = vmatprep.subr.mxu0 0.0
  %948 = vmatpush2.msra.mxu0 0.0
  %949 = vmatprep.subr.mxu0 0.0
  %950 = vmatpush2.msra.mxu0 0.0
  %951 = vmatprep.subr.mxu0 0.0
  %952 = vmatpush2.msra.mxu0 0.0
  %953 = vmatprep.subr.mxu0 0.0
  %954 = vmatpush2.msra.mxu0 0.0
  %955 = vmatprep.subr.mxu0 0.0
  %956 = vmatpush2.msra.mxu0 0.0
  %957 = vmatprep.subr.mxu0 0.0
  %958 = vmatpush2.msra.mxu0 0.0
  %959 = vmatprep.mubr.f32.mxu0 0.0
  %960 = vmatmul.mubr.f32.gmra.mxu0 %v876
  %v961 = vpop.f32.mrf.mxu0
  %v962 = vadd.f32 0.0, %v961
  %v963 = vpop.f32.mrf.mxu0
  %964 = vdwg.mxu0
  %965 = vst [vmem:[%s3] sm:$0xff] %v962
  // Predicated region
  $region14: #{mtcnet_forward.1} parent=0 // pred_check
    _
  $region15: #{mtcnet_forward.1} parent=0 // pred_check_branch
    %967 = sbr.rel (0) target = $region17
  $region16: #{mtcnet_forward.1} parent=0 // pred_region
    _
  $region17: #{mtcnet_forward.1} parent=0 // pred_fallthru
    _
  // Predicated region
  $region18: #{mtcnet_forward.1} parent=0 // pred_check
    _
  $region19: #{mtcnet_forward.1} parent=0 // pred_check_branch
    %969 = sbr.rel (0) target = $region21
  $region20: #{mtcnet_forward.1} parent=0 // pred_region
    _
  $region21: #{mtcnet_forward.1} parent=0 // pred_fallthru
    _

</llo_original>
